<compile_context>
chip_gen: v7x
topology: tpu7x:2x2x1
jax: 0.10.0
libtpu: 0.0.40
codegen_flags: <defaults>
</compile_context>

<pallas_src>
import jax
import jax.numpy as jnp
from jax.experimental import pallas as pl
from jax.experimental.pallas import tpu as pltpu

# ---- Model / problem sizes (small, consistent with the module) -------------
EMB_SIZE = 16
NUM_FILTERS = 8
OUTPUT_DIM = 32
WINDOW_SIZES = (3, 4, 5)
N_WIN = len(WINDOW_SIZES)
BATCH = 2
SEQ = 8
MAX_WS = max(WINDOW_SIZES)
MAX_PAD = MAX_WS - 1                      # widest conv padding (ws - 1)
T_MAX = SEQ + MAX_WS - 1                  # widest conv output length (12)
T_PAD = ((T_MAX + 7) // 8) * 8            # per-batch rows padded to 8-sublane multiple (16)
COLS = N_WIN * NUM_FILTERS                # 24
K_DIM = MAX_WS * EMB_SIZE                 # 80


def _target_cnn_kernel(xcols_ref, wc_ref, biasmask_ref, fcw_ref, fcb_ref, out_ref):
    """Fused forward pass for one batch block.

    xcols_ref    : (B_BLK*T_PAD, MAX_WS*EMB)  pre-built im2col slab (padded rows are 0)
    wc_ref       : (MAX_WS*EMB, N_WIN*F)      combined conv weight (zero rows for taps
                                              a shorter window does not use)
    biasmask_ref : (T_PAD, N_WIN*F)           conv bias where row t is valid for that
                                              window, else -1e30 (relu -> 0, max-neutral)
    fcw_ref      : (N_WIN*F, OUT)             fc weight, window-major row order
    fcb_ref      : (1, OUT)                   fc bias
    out_ref      : (B_BLK, OUT)               logits
    """
    rows = xcols_ref.shape[0]
    cols = wc_ref.shape[1]
    b_blk = rows // T_PAD

    # One MXU matmul covers every window, tap and batch row.
    y = jnp.dot(xcols_ref[...], wc_ref[...],
                preferred_element_type=jnp.float32)            # (rows, cols)

    # Bias + row-validity folded into a single add; ReLU zeroes invalid / padded rows.
    # TODO(synk): F.dropout(p=0.2) is stochastic; implemented as identity (inference).
    y = jnp.maximum(y.reshape(b_blk, T_PAD, cols) + biasmask_ref[...], 0.0)

    # max_pool1d over the full (8-aligned) temporal extent, per batch row.
    pooled = jnp.max(y, axis=1)                                # (b_blk, cols)

    # FC layer + single dense store of the whole (b_blk, OUT) block.
    out_ref[...] = (jnp.dot(pooled, fcw_ref[...],
                            preferred_element_type=jnp.float32) + fcb_ref[...])


def target_cnn_embedding(x, params):
    """Forward pass. x: (B, SEQ, EMB) float32. Returns (B, OUTPUT_DIM) logits."""
    conv_ws, conv_bs, fc_w, fc_b = params
    batch = x.shape[0]

    # ---- wrapper-side layout plumbing (plain JAX, not kernel compute) -------
    # im2col: pad once so every tap j in [0, MAX_WS) of every row t in [0, T_PAD) is
    # in range; slab row (b*T_PAD + t), lane block j holds xpad[b, t + j, :].
    right_pad = (T_PAD + MAX_WS - 1) - (MAX_PAD + SEQ)
    xpad = jnp.pad(x, ((0, 0), (MAX_PAD, right_pad), (0, 0)))
    taps = [xpad[:, j:j + T_PAD, :] for j in range(MAX_WS)]
    x_cols = jnp.concatenate(taps, axis=-1).reshape(batch * T_PAD, K_DIM)

    # Combined im2col weight: window ws uses taps j in [MAX_WS-ws, MAX_WS-1]
    # (conv tap k = j - (MAX_WS - ws)); other taps get zero rows.
    wc = jnp.zeros((MAX_WS, EMB_SIZE, COLS), jnp.float32)
    for wi, ws in enumerate(WINDOW_SIZES):
        w = jnp.transpose(conv_ws[ws][:, 0], (1, 2, 0))        # (ws, EMB, F)
        wc = wc.at[MAX_WS - ws:, :,
                   wi * NUM_FILTERS:(wi + 1) * NUM_FILTERS].set(w)
    wc = wc.reshape(K_DIM, COLS)

    # Bias + validity in one batch-independent (T_PAD, COLS) slab: row t of window ws
    # is valid iff t < SEQ + ws - 1; invalid rows get -1e30 so relu() zeroes them.
    bias_all = jnp.concatenate([conv_bs[ws] for ws in WINDOW_SIZES])        # (COLS,)
    valid_len = jnp.repeat(
        jnp.asarray([SEQ + ws - 1 for ws in WINDOW_SIZES], jnp.int32), NUM_FILTERS)
    row_idx = jnp.arange(T_PAD, dtype=jnp.int32)[:, None]
    bias_mask = jnp.where(row_idx < valid_len[None, :],
                          bias_all[None, :], jnp.float32(-1e30))            # (T_PAD, COLS)

    # torch fc weight: (OUT, F*N_WIN), input index f*N_WIN + wi (filter-major flatten).
    # Kernel pooled columns are wi*F + f -> permute rows accordingly.
    fcw_k = fc_w.T.reshape(NUM_FILTERS, N_WIN, OUTPUT_DIM)
    fcw_k = jnp.transpose(fcw_k, (1, 0, 2)).reshape(COLS, OUTPUT_DIM)
    fcb_k = fc_b.reshape(1, OUTPUT_DIM)

    # ---- pallas_call: batch grid axis, full-block weights --------------------
    # TODO(synk): at production batch sizes pick b_blk so b_blk*T_PAD >= 128 (multiple
    # of 8), keep blocks within v7x's 64 MiB VMEM, and consider bf16 matmul operands.
    b_blk = batch                         # toy size: one grid step
    grid = (pl.cdiv(batch, b_blk),)

    flops = 2 * (batch * T_PAD) * K_DIM * COLS + 2 * batch * COLS * OUTPUT_DIM
    bytes_accessed = 4 * (x_cols.size + wc.size + bias_mask.size
                          + fcw_k.size + fcb_k.size + batch * OUTPUT_DIM)

    return pl.pallas_call(
        _target_cnn_kernel,
        out_shape=jax.ShapeDtypeStruct((batch, OUTPUT_DIM), jnp.float32),
        grid=grid,
        in_specs=[
            pl.BlockSpec((b_blk * T_PAD, K_DIM), lambda i: (i, 0)),
            pl.BlockSpec((K_DIM, COLS), lambda i: (0, 0)),
            pl.BlockSpec((T_PAD, COLS), lambda i: (0, 0)),
            pl.BlockSpec((COLS, OUTPUT_DIM), lambda i: (0, 0)),
            pl.BlockSpec((1, OUTPUT_DIM), lambda i: (0, 0)),
        ],
        out_specs=pl.BlockSpec((b_blk, OUTPUT_DIM), lambda i: (i, 0)),
        compiler_params=pltpu.CompilerParams(
            dimension_semantics=("parallel",)),
        cost_estimate=pl.CostEstimate(
            flops=flops, transcendentals=0, bytes_accessed=bytes_accessed),
    )(x_cols, wc, bias_mask, fcw_k, fcb_k)


# ---- Pure-JAX reference (mirrors the PyTorch forward, dropout = identity) ---
def reference_forward(x, params):
    conv_ws, conv_bs, fc_w, fc_b = params
    xi = x[:, None, :, :]                                    # (B, 1, S, E) == NCHW
    pooled_list = []
    for ws in WINDOW_SIZES:
        y = jax.lax.conv_general_dilated(
            xi, conv_ws[ws], window_strides=(1, 1),
            padding=[(ws - 1, ws - 1), (0, 0)],
            dimension_numbers=("NCHW", "OIHW", "NCHW"))
        y = y + conv_bs[ws][None, :, None, None]
        y = jnp.maximum(y, 0.0)                              # relu
        y = jnp.squeeze(y, -1)                               # (B, F, S+ws-1)
        y = jnp.max(y, axis=2)                               # max_pool1d over full length
        pooled_list.append(y)                                # (B, F)
    feat = jnp.stack(pooled_list, axis=-1)                   # (B, F, 3) == torch.cat(dim=2)
    feat = feat.reshape(feat.shape[0], -1)                   # filter-major flatten
    return feat @ fc_w.T + fc_b


def init_params(key):
    keys = jax.random.split(key, 2 * N_WIN + 2)
    conv_ws, conv_bs = {}, {}
    for i, ws in enumerate(WINDOW_SIZES):
        conv_ws[ws] = 0.1 * jax.random.normal(
            keys[2 * i], (NUM_FILTERS, 1, ws, EMB_SIZE), jnp.float32)
        conv_bs[ws] = 0.1 * jax.random.normal(
            keys[2 * i + 1], (NUM_FILTERS,), jnp.float32)
    fc_w = 0.1 * jax.random.normal(
        keys[-2], (OUTPUT_DIM, NUM_FILTERS * N_WIN), jnp.float32)
    fc_b = 0.1 * jax.random.normal(keys[-1], (OUTPUT_DIM,), jnp.float32)
    return conv_ws, conv_bs, fc_w, fc_b


if __name__ == "__main__":
    root = jax.random.PRNGKey(0)
    k_param, k_x = jax.random.split(root)
    params = init_params(k_param)
    x = jax.random.normal(k_x, (BATCH, SEQ, EMB_SIZE), jnp.float32)

    fwd = jax.jit(target_cnn_embedding)
    out = jax.block_until_ready(fwd(x, params))
    assert out.shape == (BATCH, OUTPUT_DIM), out.shape

    ref = jax.block_until_ready(reference_forward(x, params))
    assert jnp.allclose(out, ref, atol=1e-4, rtol=1e-4), (out, ref)

    print("KERNEL_OK")
</pallas_src>

<mosaic_0001>
module attributes {stable_mosaic.version = 11 : i64} {
  func.func @_target_cnn_kernel(%arg0: i32, %arg1: memref<32x80xf32, #tpu.memory_space<vmem>>, %arg2: memref<80x24xf32, #tpu.memory_space<vmem>>, %arg3: memref<16x24xf32, #tpu.memory_space<vmem>>, %arg4: memref<24x32xf32, #tpu.memory_space<vmem>>, %arg5: memref<1x32xf32, #tpu.memory_space<vmem>>, %arg6: memref<2x32xf32, #tpu.memory_space<vmem>>) attributes {dimension_semantics = [#tpu.dimension_semantics<parallel>], iteration_bounds = array<i64: 1>, scalar_prefetch = 0 : i64, scratch_operands = 0 : i64, tpu.core_type = #tpu.core_type<tc>, window_params = [{transform_indices = @transform_0, window_bounds = array<i64: 32, 80>}, {pipeline_mode = #tpu.pipeline_mode<synchronous>, transform_indices = @transform_1, window_bounds = array<i64: 80, 24>}, {pipeline_mode = #tpu.pipeline_mode<synchronous>, transform_indices = @transform_2, window_bounds = array<i64: 16, 24>}, {pipeline_mode = #tpu.pipeline_mode<synchronous>, transform_indices = @transform_3, window_bounds = array<i64: 24, 32>}, {pipeline_mode = #tpu.pipeline_mode<synchronous>, transform_indices = @transform_4, window_bounds = array<i64: 1, 32>}, {transform_indices = @transform_5, window_bounds = array<i64: 2, 32>}]} {
    %c0 = arith.constant 0 : index
    %c0_0 = arith.constant 0 : index
    %0 = vector.load %arg1[%c0, %c0_0] : memref<32x80xf32, #tpu.memory_space<vmem>>, vector<32x80xf32>
    %c0_1 = arith.constant 0 : index
    %c0_2 = arith.constant 0 : index
    %1 = vector.load %arg2[%c0_1, %c0_2] : memref<80x24xf32, #tpu.memory_space<vmem>>, vector<80x24xf32>
    %cst = arith.constant dense<0.000000e+00> : vector<32x24xf32>
    %2 = tpu.matmul %0, %1, %cst {dimension_numbers = #tpu.dot_dimension_numbers<[1], [0], [0], [1], [0, 0, 1, 1], [], []>} : vector<32x80xf32>, vector<80x24xf32>, vector<32x24xf32> -> vector<32x24xf32>
    %3 = vector.shape_cast %2 : vector<32x24xf32> to vector<2x16x24xf32>
    %c0_3 = arith.constant 0 : index
    %c0_4 = arith.constant 0 : index
    %4 = vector.load %arg3[%c0_3, %c0_4] : memref<16x24xf32, #tpu.memory_space<vmem>>, vector<16x24xf32>
    %5 = vector.shape_cast %4 : vector<16x24xf32> to vector<1x16x24xf32>
    %6 = vector.broadcast %5 : vector<1x16x24xf32> to vector<2x16x24xf32>
    %7 = arith.addf %3, %6 : vector<2x16x24xf32>
    %cst_5 = arith.constant 0.000000e+00 : f32
    %8 = vector.broadcast %cst_5 : f32 to vector<2x16x24xf32>
    %9 = arith.maximumf %7, %8 : vector<2x16x24xf32>
    %cst_6 = arith.constant dense<0xFF800000> : vector<2x24xf32>
    %10 = vector.multi_reduction <maximumf>, %9, %cst_6 [1] : vector<2x16x24xf32> to vector<2x24xf32>
    %c0_7 = arith.constant 0 : index
    %c0_8 = arith.constant 0 : index
    %11 = vector.load %arg4[%c0_7, %c0_8] : memref<24x32xf32, #tpu.memory_space<vmem>>, vector<24x32xf32>
    %cst_9 = arith.constant dense<0.000000e+00> : vector<2x32xf32>
    %12 = tpu.matmul %10, %11, %cst_9 {dimension_numbers = #tpu.dot_dimension_numbers<[1], [0], [0], [1], [0, 0, 1, 1], [], []>} : vector<2x24xf32>, vector<24x32xf32>, vector<2x32xf32> -> vector<2x32xf32>
    %c0_10 = arith.constant 0 : index
    %c0_11 = arith.constant 0 : index
    %13 = vector.load %arg5[%c0_10, %c0_11] : memref<1x32xf32, #tpu.memory_space<vmem>>, vector<1x32xf32>
    %14 = vector.broadcast %13 : vector<1x32xf32> to vector<2x32xf32>
    %15 = arith.addf %12, %14 : vector<2x32xf32>
    %c0_12 = arith.constant 0 : index
    %c0_13 = arith.constant 0 : index
    %16 = vector.load %arg6[%c0_12, %c0_13] : memref<2x32xf32, #tpu.memory_space<vmem>>, vector<2x32xf32>
    tpu.vector_store %arg6[%c0_12, %c0_13], %15 {strides = array<i32>} : memref<2x32xf32, #tpu.memory_space<vmem>>, vector<2x32xf32>,
    return
  }
  func.func @transform_0(%arg0: i32) -> (i32, i32) {
    %c0_i32 = arith.constant 0 : i32
    %c0_i32_0 = arith.constant 0 : i32
    return %arg0, %c0_i32 : i32, i32
  }
  func.func @transform_1(%arg0: i32) -> (i32, i32) {
    %c0_i32 = arith.constant 0 : i32
    %c0_i32_0 = arith.constant 0 : i32
    %c0_i32_1 = arith.constant 0 : i32
    return %c0_i32, %c0_i32_0 : i32, i32
  }
  func.func @transform_2(%arg0: i32) -> (i32, i32) {
    %c0_i32 = arith.constant 0 : i32
    %c0_i32_0 = arith.constant 0 : i32
    %c0_i32_1 = arith.constant 0 : i32
    return %c0_i32, %c0_i32_0 : i32, i32
  }
  func.func @transform_3(%arg0: i32) -> (i32, i32) {
    %c0_i32 = arith.constant 0 : i32
    %c0_i32_0 = arith.constant 0 : i32
    %c0_i32_1 = arith.constant 0 : i32
    return %c0_i32, %c0_i32_0 : i32, i32
  }
  func.func @transform_4(%arg0: i32) -> (i32, i32) {
    %c0_i32 = arith.constant 0 : i32
    %c0_i32_0 = arith.constant 0 : i32
    %c0_i32_1 = arith.constant 0 : i32
    return %c0_i32, %c0_i32_0 : i32, i32
  }
  func.func @transform_5(%arg0: i32) -> (i32, i32) {
    %c0_i32 = arith.constant 0 : i32
    %c0_i32_0 = arith.constant 0 : i32
    return %arg0, %c0_i32 : i32, i32
  }
}

</mosaic_0001>

<llo_original>
// kernel: lt.11
$region0: #{lt.11}
  %s0 = inlined_call_operand.vmem [shape: s32[3,8], index: 0, kind: input, shape index: {}]
  %s1 = inlined_call_operand.vmem [shape: s32[24], index: 1, kind: output, shape index: {}]
  $region1: #{lt.11} parent=0
    #allocation0 [shape = 'u8[4096]{0}', space=vmem, size = 0x1000, scoped, tag = 'scoped mem for output reshape']
    #allocation1 [shape = 'u8[4096]{0}', space=vmem, size = 0x1000, scoped, tag = 'scoped mem for input reshape']
    %s3 = sshllo.u32 0, 4
    %v4 = vld [vmem:[%s0] sm:%s3]
    %5 = vst [vmem:[#allocation1] sm:%s3] %v4
    %v6 = vld [vmem:[#allocation1] sm:$0x1]
    %vm7 = vcmask 64512
    %8 = vst.msk [vmem:[#allocation0] sm:$0x1] %vm7, %v6
    %s9 = scalar_lea.vmem [#allocation1], 2
    %v10 = vld [vmem:[%s9] sm:$0x1]
    %11 = vrot.lane.b32.xlu0 %v10, 16
    %v12 = vpop.permute.xlu0 %11
    %vm13 = vcmask 195712
    %14 = vst.msk [vmem:[#allocation0] sm:$0x1] %vm13, %v12
    %s15 = scalar_lea.vmem [#allocation1], 1
    %v16 = vld [vmem:[%s15] sm:$0x1]
    %17 = vrot.lane.b32.xlu0 %v16, 8
    %v18 = vpop.permute.xlu0 %17
    %vm19 = vcmask 130112
    %20 = vst.msk [vmem:[#allocation0] sm:$0x1] %vm19, %v18
    %s22 = sshllo.u32 0, 1
    %v24 = vld [vmem:[#allocation0] sm:%s22]
    %s25 = sshllo.u32 0, 1
    %26 = vst [vmem:[%s1] sm:%s25] %v24

// kernel: target_cnn_embedding.1
$region0: #{target_cnn_embedding.1}
  #allocation0 [shape = 'u32[]', space=smem, size = 0x4, offset = 0x4, fixed_abs, tag = 'smem constant byte address 0x4 - core index']
  #allocation1 [shape = 'u32[144,128]{1,0:T(1,128)}', space=vmem, size = 0x12000, scoped, tag = 'internal scratch']
  %s0 = inlined_call_operand.vmem [shape: f32[32,80], index: 0, kind: input, shape index: {}]
  %s1 = inlined_call_operand.vmem [shape: f32[80,24], index: 1, kind: input, shape index: {}]
  %s2 = inlined_call_operand.vmem [shape: f32[16,24], index: 2, kind: input, shape index: {}]
  %s3 = inlined_call_operand.vmem [shape: f32[24,32], index: 3, kind: input, shape index: {}]
  %s4 = inlined_call_operand.vmem [shape: f32[1,32], index: 4, kind: input, shape index: {}]
  %s5 = inlined_call_operand.hbm [shape: f32[2,32], index: 5, kind: output, shape index: {}]
  %s6 = sld [smem:[#allocation0]]
  $region30: #{target_cnn_embedding.1} parent=0
    _
  %s8 = ssub.s32 1, %s6
  %s9 = scalar_select 0, %s8, %s6
  $region1: #{target_cnn_embedding.1} parent=0
    #allocation2 [shape = 'u8[1024]{0}', space=vmem, size = 0x400, scoped, tag = 'output window, operand 0, single buffered']
    #allocation3 [shape = 's32[1]{0}', space=sflag, size = 0x4, scoped, tag = 'scoped memory for target_cnn_embedding.1']
    %10 = vsyncpa [#allocation3], 0
    // Predicated region
    $region2: #{target_cnn_embedding.1} parent=1 // pred_check
      _
    $region3: #{target_cnn_embedding.1} parent=1 // pred_check_branch
      %12 = sbr.rel (0) target = $region5
    $region4: #{target_cnn_embedding.1} parent=1 // pred_region
      _
    $region5: #{target_cnn_embedding.1} parent=1 // pred_fallthru
      _
    // Predicated region
    $region6: #{target_cnn_embedding.1} parent=1 // pred_check
      _
    $region7: #{target_cnn_embedding.1} parent=1 // pred_check_branch
      %14 = sbr.rel (0) target = $region9
    $region8: #{target_cnn_embedding.1} parent=1 // pred_region
      _
    $region9: #{target_cnn_embedding.1} parent=1 // pred_fallthru
      _
    // Predicated region
    $region10: #{target_cnn_embedding.1} parent=1 // pred_check
      _
    $region11: #{target_cnn_embedding.1} parent=1 // pred_check_branch
      %16 = sbr.rel (0) target = $region13
    $region12: #{target_cnn_embedding.1} parent=1 // pred_region
      _
    $region13: #{target_cnn_embedding.1} parent=1 // pred_fallthru
      _
    // Predicated region
    $region14: #{target_cnn_embedding.1} parent=1 // pred_check
      _
    $region15: #{target_cnn_embedding.1} parent=1 // pred_check_branch
      %18 = sbr.rel (0) target = $region17
    $region16: #{target_cnn_embedding.1} parent=1 // pred_region
      _
    $region17: #{target_cnn_embedding.1} parent=1 // pred_fallthru
      _
    // Predicated region
    $region18: #{target_cnn_embedding.1} parent=1 // pred_check
      _
    $region19: #{target_cnn_embedding.1} parent=1 // pred_check_branch
      %20 = sbr.rel (0) target = $region21
    $region20: #{target_cnn_embedding.1} parent=1 // pred_region
      _
    $region21: #{target_cnn_embedding.1} parent=1 // pred_fallthru
      _
    %v21 = vld [vmem:[%s0] sm:$0xff]
    %v22 = vld [vmem:[%s0 + $0x8] sm:$0xff]
    %v23 = vld [vmem:[%s0 + $0x10] sm:$0xff]
    %v24 = vld [vmem:[%s0 + $0x18] sm:$0xff]
    %v25 = vld [vmem:[%s1] sm:$0xff]
    %v26 = vld [vmem:[%s1 + $0x8] sm:$0xff]
    %v27 = vld [vmem:[%s1 + $0x10] sm:$0xff]
    %v28 = vld [vmem:[%s1 + $0x18] sm:$0xff]
    %v29 = vld [vmem:[%s1 + $0x20] sm:$0xff]
    %v30 = vld [vmem:[%s1 + $0x28] sm:$0xff]
    %v31 = vld [vmem:[%s1 + $0x30] sm:$0xff]
    %v32 = vld [vmem:[%s1 + $0x38] sm:$0xff]
    %v33 = vld [vmem:[%s1 + $0x40] sm:$0xff]
    %v34 = vld [vmem:[%s1 + $0x48] sm:$0xff]
    %vm35 = vcmask 654336
    %v37 = vsel %vm35, %v21, 0
    %v40 = vsel %vm35, %v22, 0
    %v43 = vsel %vm35, %v23, 0
    %v46 = vsel %vm35, %v24, 0
    %48 = vmatprep.subr.mxu0 0.0
    %49 = vmatpush1.msra.mxu0 %v25
    %50 = vmatprep.subr.mxu0 0.0
    %51 = vmatpush1.msra.mxu0 %v26
    %52 = vmatprep.subr.mxu0 0.0
    %53 = vmatpush1.msra.mxu0 %v27
    %54 = vmatprep.subr.mxu0 0.0
    %55 = vmatpush1.msra.mxu0 %v28
    %56 = vmatprep.subr.mxu0 0.0
    %57 = vmatpush1.msra.mxu0 %v29
    %58 = vmatprep.subr.mxu0 0.0
    %59 = vmatpush1.msra.mxu0 %v30
    %60 = vmatprep.subr.mxu0 0.0
    %61 = vmatpush1.msra.mxu0 %v31
    %62 = vmatprep.subr.mxu0 0.0
    %63 = vmatpush1.msra.mxu0 %v32
    %64 = vmatprep.subr.mxu0 0.0
    %65 = vmatpush1.msra.mxu0 %v33
    %66 = vmatprep.subr.mxu0 0.0
    %67 = vmatpush1.msra.mxu0 %v34
    %68 = vmatprep.subr.mxu0 0.0
    %69 = vmatpush1.msra.mxu0 0.0
    %70 = vmatprep.subr.mxu0 0.0
    %71 = vmatpush1.msra.mxu0 0.0
    %72 = vmatprep.subr.mxu0 0.0
    %73 = vmatpush1.msra.mxu0 0.0
    %74 = vmatprep.subr.mxu0 0.0
    %75 = vmatpush1.msra.mxu0 0.0
    %76 = vmatprep.subr.mxu0 0.0
    %77 = vmatpush1.msra.mxu0 0.0
    %78 = vmatprep.subr.mxu0 0.0
    %79 = vmatpush1.msra.mxu0 0.0
    %80 = vmatprep.subr.mxu0 0.0
    %81 = vmatpush1.msra.mxu0 0.0
    %82 = vmatprep.subr.mxu0 0.0
    %83 = vmatpush1.msra.mxu0 0.0
    %84 = vmatprep.subr.mxu0 0.0
    %85 = vmatpush1.msra.mxu0 0.0
    %86 = vmatprep.subr.mxu0 0.0
    %87 = vmatpush1.msra.mxu0 0.0
    %88 = vmatprep.subr.mxu0 0.0
    %89 = vmatpush1.msra.mxu0 0.0
    %90 = vmatprep.subr.mxu0 0.0
    %91 = vmatpush1.msra.mxu0 0.0
    %92 = vmatprep.subr.mxu0 0.0
    %93 = vmatpush1.msra.mxu0 0.0
    %94 = vmatprep.subr.mxu0 0.0
    %95 = vmatpush1.msra.mxu0 0.0
    %96 = vmatprep.subr.mxu0 0.0
    %97 = vmatpush1.msra.mxu0 0.0
    %98 = vmatprep.subr.mxu0 0.0
    %99 = vmatpush1.msra.mxu0 0.0
    %100 = vmatprep.subr.mxu0 0.0
    %101 = vmatpush1.msra.mxu0 0.0
    %102 = vmatprep.subr.mxu0 0.0
    %103 = vmatpush1.msra.mxu0 0.0
    %104 = vmatprep.subr.mxu0 0.0
    %105 = vmatpush1.msra.mxu0 0.0
    %106 = vmatprep.subr.mxu0 0.0
    %107 = vmatpush1.msra.mxu0 0.0
    %108 = vmatprep.subr.mxu0 0.0
    %109 = vmatpush1.msra.mxu0 0.0
    %110 = vmatprep.subr.mxu0 0.0
    %111 = vmatpush1.msra.mxu0 0.0
    %112 = vmatprep.mubr.f32.mxu0 0.0
    %113 = vmatmul.mubr.f32.gmra.mrb[0].mxu0 %v37
    %v114 = vpop.f32.mrb[0].mxu0
    %v115 = vadd.f32 0.0, %v114
    %v116 = vpop.f32.mrb[0].mxu0
    %117 = vmatprep.mubr.f32.mxu0 0.0
    %118 = vmatmul.mubr.f32.gmra.mrb[0].mxu0 %v40
    %v119 = vpop.f32.mrb[0].mxu0
    %v120 = vadd.f32 0.0, %v119
    %v121 = vpop.f32.mrb[0].mxu0
    %122 = vmatprep.mubr.f32.mxu0 0.0
    %123 = vmatmul.mubr.f32.gmra.mrb[0].mxu0 %v43
    %v124 = vpop.f32.mrb[0].mxu0
    %v125 = vadd.f32 0.0, %v124
    %v126 = vpop.f32.mrb[0].mxu0
    %127 = vmatprep.mubr.f32.mxu0 0.0
    %128 = vmatmul.mubr.f32.gmra.mrb[0].mxu0 %v46
    %v129 = vpop.f32.mrb[0].mxu0
    %v130 = vadd.f32 0.0, %v129
    %v131 = vpop.f32.mrb[0].mxu0
    %132 = vdwg.mxu0
    %v133 = vld [vmem:[%s2] sm:$0xff]
    %v134 = vld [vmem:[%s2 + $0x8] sm:$0xff]
    %v135 = vadd.f32 %v115, %v133
    %v136 = vadd.f32 %v120, %v134
    %v137 = vadd.f32 %v125, %v133
    %v138 = vadd.f32 %v130, %v134
    %v139 = vmax.f32 %v135, 0.0
    %v140 = vmax.f32 %v136, 0.0
    %v141 = vmax.f32 %v137, 0.0
    %v142 = vmax.f32 %v138, 0.0
    %vm143 = vcmask 195584
    %v144 = vsel %vm143, %v139, -inf
    %v145 = vsel %vm143, %v140, -inf
    %v146 = vmax.f32 %v144, %v145
    %v147 = vrot.slane %v146, 4
    %v148 = vmax.f32 %v146, %v147
    %v149 = vrot.slane %v148, 2
    %v150 = vmax.f32 %v148, %v149
    %v151 = vrot.slane %v150, 1
    %v152 = vmax.f32 %v150, %v151
    %v153 = vsel %vm143, %v141, -inf
    %v154 = vsel %vm143, %v142, -inf
    %v155 = vmax.f32 %v153, %v154
    %v156 = vrot.slane %v155, 4
    %v157 = vmax.f32 %v155, %v156
    %v158 = vrot.slane %v157, 2
    %v159 = vmax.f32 %v157, %v158
    %v160 = vrot.slane %v159, 1
    %v161 = vmax.f32 %v159, %v160
    %v162 = vld [vmem:[%s3] sm:$0xff]
    %v163 = vld [vmem:[%s3 + $0x8] sm:$0xff]
    %v164 = vld [vmem:[%s3 + $0x10] sm:$0xff]
    %v165 = vld [vmem:[%s4] sm:$0x1]
    %v167 = vlaneseq
    %v168 = vshrl.u32 %v167, 7
    %v169 = vsub.s32 0, %v168
    %v170 = vrot.slane %v165, %v169
    %vm174 = vcmask 1041409
    %v175 = vsel %vm174, %v161, %v152
    %v176 = vsel %vm143, %v175, 0
    %178 = vmatprep.subr.mxu0 0.0
    %179 = vmatpush1.msra.mxu0 %v162
    %180 = vmatprep.subr.mxu0 0.0
    %181 = vmatpush1.msra.mxu0 %v163
    %182 = vmatprep.subr.mxu0 0.0
    %183 = vmatpush1.msra.mxu0 %v164
    %184 = vmatprep.subr.mxu0 0.0
    %185 = vmatpush1.msra.mxu0 0.0
    %186 = vmatprep.subr.mxu0 0.0
    %187 = vmatpush1.msra.mxu0 0.0
    %188 = vmatprep.subr.mxu0 0.0
    %189 = vmatpush1.msra.mxu0 0.0
    %190 = vmatprep.subr.mxu0 0.0
    %191 = vmatpush1.msra.mxu0 0.0
    %192 = vmatprep.subr.mxu0 0.0
    %193 = vmatpush1.msra.mxu0 0.0
    %194 = vmatprep.subr.mxu0 0.0
    %195 = vmatpush1.msra.mxu0 0.0
    %196 = vmatprep.subr.mxu0 0.0
    %197 = vmatpush1.msra.mxu0 0.0
    %198 = vmatprep.subr.mxu0 0.0
    %199 = vmatpush1.msra.mxu0 0.0
    %200 = vmatprep.subr.mxu0 0.0
    %201 = vmatpush1.msra.mxu0 0.0
    %202 = vmatprep.subr.mxu0 0.0
    %203 = vmatpush1.msra.mxu0 0.0
    %204 = vmatprep.subr.mxu0 0.0
    %205 = vmatpush1.msra.mxu0 0.0
    %206 = vmatprep.subr.mxu0 0.0
    %207 = vmatpush1.msra.mxu0 0.0
    %208 = vmatprep.subr.mxu0 0.0
    %209 = vmatpush1.msra.mxu0 0.0
    %210 = vmatprep.subr.mxu0 0.0
    %211 = vmatpush1.msra.mxu0 0.0
    %212 = vmatprep.subr.mxu0 0.0
    %213 = vmatpush1.msra.mxu0 0.0
    %214 = vmatprep.subr.mxu0 0.0
    %215 = vmatpush1.msra.mxu0 0.0
    %216 = vmatprep.subr.mxu0 0.0
    %217 = vmatpush1.msra.mxu0 0.0
    %218 = vmatprep.subr.mxu0 0.0
    %219 = vmatpush1.msra.mxu0 0.0
    %220 = vmatprep.subr.mxu0 0.0
    %221 = vmatpush1.msra.mxu0 0.0
    %222 = vmatprep.subr.mxu0 0.0
    %223 = vmatpush1.msra.mxu0 0.0
    %224 = vmatprep.subr.mxu0 0.0
    %225 = vmatpush1.msra.mxu0 0.0
    %226 = vmatprep.subr.mxu0 0.0
    %227 = vmatpush1.msra.mxu0 0.0
    %228 = vmatprep.subr.mxu0 0.0
    %229 = vmatpush1.msra.mxu0 0.0
    %230 = vmatprep.subr.mxu0 0.0
    %231 = vmatpush1.msra.mxu0 0.0
    %232 = vmatprep.subr.mxu0 0.0
    %233 = vmatpush1.msra.mxu0 0.0
    %234 = vmatprep.subr.mxu0 0.0
    %235 = vmatpush1.msra.mxu0 0.0
    %236 = vmatprep.subr.mxu0 0.0
    %237 = vmatpush1.msra.mxu0 0.0
    %238 = vmatprep.subr.mxu0 0.0
    %239 = vmatpush1.msra.mxu0 0.0
    %240 = vmatprep.subr.mxu0 0.0
    %241 = vmatpush1.msra.mxu0 0.0
    %242 = vmatprep.mubr.f32.mxu0 0.0
    %243 = vmatmul.mubr.f32.gmra.mrb[0].mxu0 %v176
    %v244 = vpop.f32.mrb[0].mxu0
    %v245 = vadd.f32 %v170, %v244
    %v246 = vpop.f32.mrb[0].mxu0
    %247 = vdwg.mxu0
    %vm248 = vcmask 254976
    %249 = vst.msk [vmem:[#allocation2] sm:$0x3] %vm248, %v245
    // Predicated region
    $region22: #{target_cnn_embedding.1} parent=1 // pred_check
      _
    $region23: #{target_cnn_embedding.1} parent=1 // pred_check_branch
      %251 = sbr.rel (0) target = $region25
    $region24: #{target_cnn_embedding.1} parent=1 // pred_region
      %s253 = ssub.s32 32, 32
      %254 = vsyncadd [#allocation3], %s253
      %s256 = sshll.u32 [#allocation2], 4
      %s257 = int_to_ptr.vmem [resolvable:$true] %s256
      %259 = dma.vmem_to_hbm [thread:$0]  %s257, 32, %s5, [#allocation3]
    $region25: #{target_cnn_embedding.1} parent=1 // pred_fallthru
      _
    // Predicated region
    $region26: #{target_cnn_embedding.1} parent=1 // pred_check
      _
    $region27: #{target_cnn_embedding.1} parent=1 // pred_check_branch
      %261 = sbr.rel (0) target = $region29
    $region28: #{target_cnn_embedding.1} parent=1 // pred_region
      %262 = dma.done [#allocation3], 32
    $region29: #{target_cnn_embedding.1} parent=1 // pred_fallthru
      _
    %263 = vsyncpa [#allocation3], 1

</llo_original>
